<compile_context>
chip_gen: v6e
topology: v6e:2x2x1
jax: 0.10.0
libtpu: 0.0.40
codegen_flags: <defaults>
</compile_context>

<pallas_src>
import functools

import jax
import jax.numpy as jnp
import numpy as np
from jax.experimental import pallas as pl
from jax.experimental.pallas import tpu as pltpu


def _mha_kernel(x_ref, w_ref, t_ref, m_ref, out_ref, *, lam, block_b, matmul_dtype):
    """One grid step = one batch tile of `block_b` images; all CSRA heads fused.

    Shapes inside one grid step:
      x_ref  : (block_b, C, S)   input dtype (NCHW with H*W flattened to S)
      w_ref  : (HK, C)           norm-folded fused head weights, matmul dtype
      t_ref  : (HK, 1)  f32      per-(head,class) temperature
      m_ref  : (HK, 1)  f32      1.0 where the head uses max pooling (T == 99)
      out_ref: (block_b, HK, 1)  f32  per-(head,class) logits (head-sum done outside)
    """
    w = w_ref[...]
    t = t_ref[...]
    use_max = m_ref[...] > 0.5
    inv_s = 1.0 / x_ref.shape[-1]

    def per_image(i, carry):
        x_i = x_ref[i].astype(matmul_dtype)                            # (C, S)
        # score^T = (HK, C) @ (C, S): contracting dim is already on the lanes of w
        # and the sublanes of x -> natural MXU orientation, no transposes of x.
        score = jnp.dot(w, x_i, preferred_element_type=jnp.float32)    # (HK, S) f32

        base = jnp.sum(score, axis=1, keepdims=True) * inv_s           # (HK, 1)
        att_max = jnp.max(score, axis=1, keepdims=True)                # (HK, 1)

        # Softmax-weighted sum over S.  Shift by t*att_max (== max_S(t*score) since
        # every CSRA temperature is > 0): reuses att_max, no extra reduction and no
        # materialized z = t*score temporary.
        e = jnp.exp(t * (score - att_max))                             # (HK, S)
        denom = jnp.sum(e, axis=1, keepdims=True)                      # (HK, 1), >= 1
        numer = jnp.sum(score * e, axis=1, keepdims=True)              # (HK, 1)
        att_soft = numer / denom                                       # exact divide

        att = jnp.where(use_max, att_max, att_soft)                    # (HK, 1)
        out_ref[i] = (base + lam * att).astype(out_ref.dtype)          # (HK, 1)
        return carry

    jax.lax.fori_loop(0, block_b, per_image, 0)


def _choose_batch_tile(B, C, S, HK, x_bytes, mm_bytes, budget_bytes, min_tiles=4):
    """Largest batch tile that fits the VMEM budget, preferring >= min_tiles grid
    steps (2-TC megacore sharding + DMA prefetch of the next tile)."""
    def est(bt):
        return (2 * bt * C * S * x_bytes      # double-buffered streaming x tile
                + 2 * HK * C * mm_bytes       # fused weights (constant block index)
                + C * S * mm_bytes            # in-VMEM cast of one image
                + 3 * HK * S * 4              # score / e / score*e f32 temporaries
                + 2 * bt * HK * 4             # double-buffered output tile
                + (1 << 20))                  # slack (temps/mask/semaphores/etc.)

    cands = sorted((d for d in range(1, B + 1) if B % d == 0), reverse=True)
    fitting = [bt for bt in cands if est(bt) <= budget_bytes] or [cands[-1]]
    for target in (min_tiles, 2):
        good = [bt for bt in fitting if B // bt >= target]
        if good:
            return max(good)
    return max(fitting)


def mha_forward(x_nchw, weights, temps, lam, *, matmul_dtype=jnp.bfloat16):
    """
    x_nchw : [B, C, H, W]   f32 or bf16 (bf16 halves HBM traffic; the kernel
             accumulates in f32 either way)
    weights: [num_heads, K, C]   per-head 1x1-conv weights (kernel dims squeezed)
    temps  : [num_heads]   softmax temperatures; 99 selects max pooling
    lam    : python float
    returns: [B, K] float32
    """
    B, C, H, W = x_nchw.shape
    num_heads, K, _ = weights.shape
    S = H * W
    HK = num_heads * K

    # The in-kernel softmax shift reuses t * max_S(score); valid because all CSRA
    # temperatures are > 0 (true for every temp_setting: 1..8 and 99).
    try:
        temps_np = np.asarray(temps)
    except Exception:
        temps_np = None
    if temps_np is not None:
        assert np.all(temps_np > 0.0), "CSRA temperatures must be > 0"

    # --- tiny one-time prep (all O(HK*C)); weight norm folded *before* the matmul ---
    # Fused, norm-folded, MXU-oriented weights: row h*K + k  <->  (head h, class k).
    # NOTE: no epsilon, matching the reference (all-zero class column -> inf there too).
    w_fused = weights.reshape(HK, C).astype(jnp.float32)
    inv_norm = jax.lax.rsqrt(jnp.sum(w_fused * w_fused, axis=1, keepdims=True))
    w_scaled = (w_fused * inv_norm).astype(matmul_dtype)              # (HK, C)

    temps_f = temps.astype(jnp.float32)
    t_col = jnp.repeat(temps_f, K).reshape(HK, 1)                     # (HK, 1)
    m_col = (t_col == 99.0).astype(jnp.float32)                       # (HK, 1)

    # x: only a reshape (free) -- no transpose / cast HBM pass in the wrapper.
    # TODO(synk): if the backbone can emit bf16 channels-first features directly,
    #             pass them straight in to halve the kernel's HBM read.
    x_bcs = x_nchw.reshape(B, C, S)

    # --- generation-aware tiling -------------------------------------------------
    try:
        vmem_cap = int(pltpu.get_tpu_info().vmem_capacity_bytes)
    except Exception:
        vmem_cap = 64 * 1024 * 1024          # conservative (v7x-sized) fallback
    x_bytes = jnp.dtype(x_bcs.dtype).itemsize
    mm_bytes = jnp.dtype(matmul_dtype).itemsize
    block_b = _choose_batch_tile(B, C, S, HK, x_bytes, mm_bytes,
                                 budget_bytes=vmem_cap // 2, min_tiles=4)
    num_tiles = B // block_b
    # TODO(synk): for feature maps so large that a single image (C*S) overflows VMEM,
    #             add a spatial grid axis with an online-softmax accumulator.

    kernel = functools.partial(_mha_kernel, lam=float(lam), block_b=block_b,
                               matmul_dtype=matmul_dtype)

    cost = pl.CostEstimate(
        flops=2 * B * S * C * HK,
        transcendentals=B * S * HK,
        bytes_accessed=B * C * S * x_bytes + HK * C * mm_bytes + B * HK * 4,
    )

    logits = pl.pallas_call(
        kernel,
        out_shape=jax.ShapeDtypeStruct((B, HK, 1), jnp.float32),
        grid=(num_tiles,),
        in_specs=[
            pl.BlockSpec((block_b, C, S), lambda b: (b, 0, 0)),   # streamed x tile
            pl.BlockSpec((HK, C), lambda b: (0, 0)),              # fused weights
            pl.BlockSpec((HK, 1), lambda b: (0, 0)),              # temperatures
            pl.BlockSpec((HK, 1), lambda b: (0, 0)),              # max-pool mask
        ],
        out_specs=pl.BlockSpec((block_b, HK, 1), lambda b: (b, 0, 0)),
        compiler_params=pltpu.CompilerParams(
            dimension_semantics=("parallel",),                    # batch tiles independent
            vmem_limit_bytes=min(int(vmem_cap * 0.75), 128 * 1024 * 1024),
        ),
        cost_estimate=cost,
    )(x_bcs, w_scaled, t_col, m_col)

    # Tiny epilogue: sum the heads (O(B*HK) bytes, negligible vs the x stream).
    return logits.reshape(B, num_heads, K).sum(axis=1)


def mha_reference(x_nchw, weights, temps, lam):
    """Pure-JAX f32 reference of the PyTorch MHA forward."""
    B, C, H, W = x_nchw.shape
    num_heads, K, _ = weights.shape
    x_bsc = jnp.transpose(x_nchw.reshape(B, C, H * W), (0, 2, 1)).astype(jnp.float32)
    total = jnp.zeros((B, K), jnp.float32)
    for h in range(num_heads):
        w = weights[h].astype(jnp.float32)                        # (K, C)
        norm = jnp.linalg.norm(w, axis=1)                         # (K,)
        score = jnp.einsum("bsc,kc->bsk", x_bsc, w) / norm        # (B, S, K)
        base = jnp.mean(score, axis=1)
        if float(temps[h]) == 99.0:
            att = jnp.max(score, axis=1)
        else:
            soft = jax.nn.softmax(score * temps[h], axis=1)
            att = jnp.sum(score * soft, axis=1)
        total = total + base + lam * att
    return total


if __name__ == "__main__":
    # MHA(num_heads=4, lam=0.5, input_dim=32, num_classes=8), input [2, 32, 8, 8]
    num_heads, lam = 4, 0.5
    input_dim, num_classes = 32, 8
    B, H, W = 2, 8, 8
    temp_list = [1.0, 2.0, 4.0, 99.0]            # MHA.temp_settings[4]

    key = jax.random.PRNGKey(0)
    kx, kw = jax.random.split(key)
    x = jax.random.normal(kx, (B, input_dim, H, W), jnp.float32)
    weights = 0.1 * jax.random.normal(kw, (num_heads, num_classes, input_dim), jnp.float32)
    temps = jnp.array(temp_list, jnp.float32)

    ref = mha_reference(x, weights, temps, lam)

    # Default path: bf16 MXU inputs, f32 accumulation.
    out_bf16 = jax.block_until_ready(mha_forward(x, weights, temps, lam))
    assert out_bf16.shape == (B, num_classes)
    assert jnp.allclose(out_bf16, ref, atol=3e-2, rtol=3e-2), (out_bf16, ref)

    # Full-f32 MXU path: tight tolerance.
    out_f32 = jax.block_until_ready(
        mha_forward(x, weights, temps, lam, matmul_dtype=jnp.float32))
    assert jnp.allclose(out_f32, ref, atol=1e-5, rtol=1e-5), (out_f32, ref)

    print("KERNEL_OK")
</pallas_src>

<mosaic_0001>
module attributes {stable_mosaic.version = 11 : i64} {
  func.func @_mha_kernel(%arg0: i32, %arg1: memref<1x32x64xf32, #tpu.memory_space<vmem>>, %arg2: memref<32x32xbf16, #tpu.memory_space<vmem>>, %arg3: memref<32x1xf32, #tpu.memory_space<vmem>>, %arg4: memref<32x1xf32, #tpu.memory_space<vmem>>, %arg5: memref<1x32x1xf32, #tpu.memory_space<vmem>>) attributes {dimension_semantics = [#tpu.dimension_semantics<parallel>], iteration_bounds = array<i64: 2>, scalar_prefetch = 0 : i64, scratch_operands = 0 : i64, tpu.core_type = #tpu.core_type<tc>, window_params = [{transform_indices = @transform_0, window_bounds = array<i64: 1, 32, 64>}, {pipeline_mode = #tpu.pipeline_mode<synchronous>, transform_indices = @transform_1, window_bounds = array<i64: 32, 32>}, {pipeline_mode = #tpu.pipeline_mode<synchronous>, transform_indices = @transform_2, window_bounds = array<i64: 32, 1>}, {pipeline_mode = #tpu.pipeline_mode<synchronous>, transform_indices = @transform_3, window_bounds = array<i64: 32, 1>}, {transform_indices = @transform_4, window_bounds = array<i64: 1, 32, 1>}]} {
    %c0 = arith.constant 0 : index
    %c0_0 = arith.constant 0 : index
    %0 = vector.load %arg2[%c0, %c0_0] : memref<32x32xbf16, #tpu.memory_space<vmem>>, vector<32x32xbf16>
    %c0_1 = arith.constant 0 : index
    %c0_2 = arith.constant 0 : index
    %1 = vector.load %arg3[%c0_1, %c0_2] : memref<32x1xf32, #tpu.memory_space<vmem>>, vector<32x1xf32>
    %c0_3 = arith.constant 0 : index
    %c0_4 = arith.constant 0 : index
    %2 = vector.load %arg4[%c0_3, %c0_4] : memref<32x1xf32, #tpu.memory_space<vmem>>, vector<32x1xf32>
    %cst = arith.constant 5.000000e-01 : f32
    %3 = vector.broadcast %cst : f32 to vector<32x1xf32>
    %4 = arith.cmpf ogt, %2, %3 : vector<32x1xf32>
    %c0_i32 = arith.constant 0 : i32
    %5 = arith.index_cast %c0_i32 : i32 to index
    %c0_5 = arith.constant 0 : index
    %c0_6 = arith.constant 0 : index
    %6 = vector.load %arg1[%5, %c0_5, %c0_6] : memref<1x32x64xf32, #tpu.memory_space<vmem>>, vector<1x32x64xf32>
    %7 = vector.shape_cast %6 : vector<1x32x64xf32> to vector<32x64xf32>
    %8 = arith.truncf %7 : vector<32x64xf32> to vector<32x64xbf16>
    %cst_7 = arith.constant dense<0.000000e+00> : vector<32x64xf32>
    %9 = tpu.matmul %0, %8, %cst_7 {dimension_numbers = #tpu.dot_dimension_numbers<[1], [0], [0], [1], [0, 0, 1, 1], [], []>} : vector<32x32xbf16>, vector<32x64xbf16>, vector<32x64xf32> -> vector<32x64xf32>
    %cst_8 = arith.constant dense<0.000000e+00> : vector<32xf32>
    %10 = vector.multi_reduction <add>, %9, %cst_8 [1] : vector<32x64xf32> to vector<32xf32>
    %11 = vector.shape_cast %10 : vector<32xf32> to vector<32x1xf32>
    %cst_9 = arith.constant 1.562500e-02 : f32
    %12 = vector.broadcast %cst_9 : f32 to vector<32x1xf32>
    %13 = arith.mulf %11, %12 : vector<32x1xf32>
    %cst_10 = arith.constant dense<0xFF800000> : vector<32xf32>
    %14 = vector.multi_reduction <maximumf>, %9, %cst_10 [1] : vector<32x64xf32> to vector<32xf32>
    %15 = vector.shape_cast %14 : vector<32xf32> to vector<32x1xf32>
    %16 = vector.broadcast %15 : vector<32x1xf32> to vector<32x64xf32>
    %17 = arith.subf %9, %16 : vector<32x64xf32>
    %18 = vector.broadcast %1 : vector<32x1xf32> to vector<32x64xf32>
    %19 = arith.mulf %18, %17 : vector<32x64xf32>
    %20 = math.exp %19 : vector<32x64xf32>
    %cst_11 = arith.constant dense<0.000000e+00> : vector<32xf32>
    %21 = vector.multi_reduction <add>, %20, %cst_11 [1] : vector<32x64xf32> to vector<32xf32>
    %22 = vector.shape_cast %21 : vector<32xf32> to vector<32x1xf32>
    %23 = arith.mulf %9, %20 : vector<32x64xf32>
    %cst_12 = arith.constant dense<0.000000e+00> : vector<32xf32>
    %24 = vector.multi_reduction <add>, %23, %cst_12 [1] : vector<32x64xf32> to vector<32xf32>
    %25 = vector.shape_cast %24 : vector<32xf32> to vector<32x1xf32>
    %26 = arith.divf %25, %22 : vector<32x1xf32>
    %27 = arith.select %4, %15, %26 : vector<32x1xi1>, vector<32x1xf32>
    %cst_13 = arith.constant 5.000000e-01 : f32
    %28 = vector.broadcast %cst_13 : f32 to vector<32x1xf32>
    %29 = arith.mulf %28, %27 : vector<32x1xf32>
    %30 = arith.addf %13, %29 : vector<32x1xf32>
    %31 = arith.index_cast %c0_i32 : i32 to index
    %c0_14 = arith.constant 0 : index
    %c0_15 = arith.constant 0 : index
    %32 = vector.load %arg5[%31, %c0_14, %c0_15] : memref<1x32x1xf32, #tpu.memory_space<vmem>>, vector<1x32x1xf32>
    %33 = vector.shape_cast %32 : vector<1x32x1xf32> to vector<32x1xf32>
    %34 = vector.shape_cast %30 : vector<32x1xf32> to vector<1x32x1xf32>
    tpu.vector_store %arg5[%31, %c0_14, %c0_15], %34 {strides = array<i32>} : memref<1x32x1xf32, #tpu.memory_space<vmem>>, vector<1x32x1xf32>,
    %c1_i32 = arith.constant 1 : i32
    return
  }
  func.func @transform_0(%arg0: i32) -> (i32, i32, i32) {
    %c0_i32 = arith.constant 0 : i32
    %c0_i32_0 = arith.constant 0 : i32
    %c0_i32_1 = arith.constant 0 : i32
    return %arg0, %c0_i32, %c0_i32_0 : i32, i32, i32
  }
  func.func @transform_1(%arg0: i32) -> (i32, i32) {
    %c0_i32 = arith.constant 0 : i32
    %c0_i32_0 = arith.constant 0 : i32
    %c0_i32_1 = arith.constant 0 : i32
    return %c0_i32, %c0_i32_0 : i32, i32
  }
  func.func @transform_2(%arg0: i32) -> (i32, i32) {
    %c0_i32 = arith.constant 0 : i32
    %c0_i32_0 = arith.constant 0 : i32
    %c0_i32_1 = arith.constant 0 : i32
    return %c0_i32, %c0_i32_0 : i32, i32
  }
  func.func @transform_3(%arg0: i32) -> (i32, i32) {
    %c0_i32 = arith.constant 0 : i32
    %c0_i32_0 = arith.constant 0 : i32
    %c0_i32_1 = arith.constant 0 : i32
    return %c0_i32, %c0_i32_0 : i32, i32
  }
  func.func @transform_4(%arg0: i32) -> (i32, i32, i32) {
    %c0_i32 = arith.constant 0 : i32
    %c0_i32_0 = arith.constant 0 : i32
    %c0_i32_1 = arith.constant 0 : i32
    return %arg0, %c0_i32, %c0_i32_0 : i32, i32, i32
  }
}

</mosaic_0001>

<llo_original>
// kernel: tpu_custom_call.1
$region0: #{tpu_custom_call.1}
  #allocation0 [shape = 'u32[]', space=smem, size = 0x4, offset = 0x4, fixed_abs, tag = 'smem constant byte address 0x4 - core index']
  #allocation1 [shape = 'u32[144,128]{1,0:T(1,128)}', space=vmem, size = 0x12000, scoped, tag = 'internal scratch']
  %s0 = inlined_call_operand.vmem [shape: f32[2,32,64], index: 0, kind: input, shape index: {}]
  %s1 = inlined_call_operand.hbm [shape: bf16[32,32], index: 1, kind: input, shape index: {}]
  %s2 = inlined_call_operand.vmem [shape: f32[32,1], index: 2, kind: input, shape index: {}]
  %s3 = inlined_call_operand.vmem [shape: f32[32,1], index: 3, kind: input, shape index: {}]
  %s4 = inlined_call_operand.vmem [shape: f32[2,32,1], index: 4, kind: output, shape index: {}]
  %s5 = sld [smem:[#allocation0]]
  $region53: #{tpu_custom_call.1} parent=0
    _
  %s7 = ssub.s32 1, %s5
  %s8 = scalar_select 0, %s7, %s5
  $region1: #{tpu_custom_call.1} parent=0
    #allocation2 [shape = 'u8[8192]{0}', space=vmem, size = 0x2000, scoped, tag = 'input window, operand 1, single buffered']
    #allocation3 [shape = 's32[2]{0}', space=sflag, size = 0x8, scoped, tag = 'scoped memory for tpu_custom_call.1']
    %9 = vsyncpa [#allocation3], 0
    loop: start=0, step=1, limit=4
    $region2: #{tpu_custom_call.1} parent=1 // loop_pre_header
      _
    $region3: #{tpu_custom_call.1} parent=1 // loop_header
      %s11 = sphi 0, %s15
      %p12 = scmp.ge.s32.totalorder %s11, 4
      %s21 = sphi 0, %s23
      %s24 = sphi 0, %s21
      %s25 = sphi 0, %s24
      %s41 = sphi 0, %s25
      %s45 = sphi 0, %s45
      %s47 = sphi 0, %s45
      %s48 = sphi 0, %s47
      %s62 = sphi 0, %s48
      %s66 = sphi 0, %s66
      %s68 = sphi 0, %s66
      %s69 = sphi 0, %s68
      %s83 = sphi 0, %s69
      %s87 = sphi 0, %s87
      %s89 = sphi 0, %s87
      %s90 = sphi 0, %s89
      %s104 = sphi 0, %s90
      %s110 = sphi 0, %s112
      %s113 = sphi 0, %s110
      %s114 = sphi 0, %s113
      %s130 = sphi 0, %s114
    $region4: #{tpu_custom_call.1} parent=1 // loop_header_branch
      %14 = sbr.rel (%p12) target = $region8
    $region5: #{tpu_custom_call.1} parent=1 // loop_body
      %s16 = ssub.s32 %s11, 1
      %s17 = ssub.s32 %s11, 2
      %s18 = sadd.s32 %s11, 1
      %s19 = ssub.s32 %s11, %s18
      %p20 = scmp.eq.s32.totalorder %s19, 0
      %s22 = sadd.s32 %s21, 1
      %s23 = scalar_select %p20, %s21, %s22
      %p26 = pneg %p20
      %p27 = scmp.eq.s32.totalorder %s11, 1
      %p28 = por %p26, %p27
      %p29 = scmp.ne.s32.totalorder %s21, %s24
      %p30 = scmp.eq.s32.totalorder %s11, 0
      %p31 = por %p29, %p30
      %p32 = scmp.ne.s32.totalorder %s21, %s24
      %p33 = scmp.eq.s32.totalorder %s16, 1
      %p34 = por %p32, %p33
      %p35 = scmp.ne.s32.totalorder %s24, %s25
      %p36 = scmp.eq.s32.totalorder %s16, 0
      %p37 = por %p35, %p36
      %p38 = scmp.ne.s32.totalorder %s24, %s25
      %p39 = scmp.eq.s32.totalorder %s17, 1
      %p40 = por %p38, %p39
      %p42 = scmp.ne.s32.totalorder %s25, %s41
      %p43 = scmp.eq.s32.totalorder %s17, 0
      %p44 = por %p42, %p43
      %s46 = sadd.s32 %s45, 1
      %p49 = scmp.eq.s32.totalorder %s11, 1
      %p50 = scmp.ne.s32.totalorder %s45, %s47
      %p51 = scmp.eq.s32.totalorder %s11, 0
      %p52 = por %p50, %p51
      %p53 = scmp.ne.s32.totalorder %s45, %s47
      %p54 = scmp.eq.s32.totalorder %s16, 1
      %p55 = por %p53, %p54
      %p56 = scmp.ne.s32.totalorder %s47, %s48
      %p57 = scmp.eq.s32.totalorder %s16, 0
      %p58 = por %p56, %p57
      %p59 = scmp.ne.s32.totalorder %s47, %s48
      %p60 = scmp.eq.s32.totalorder %s17, 1
      %p61 = por %p59, %p60
      %p63 = scmp.ne.s32.totalorder %s48, %s62
      %p64 = scmp.eq.s32.totalorder %s17, 0
      %p65 = por %p63, %p64
      %s67 = sadd.s32 %s66, 1
      %p70 = scmp.eq.s32.totalorder %s11, 1
      %p71 = scmp.ne.s32.totalorder %s66, %s68
      %p72 = scmp.eq.s32.totalorder %s11, 0
      %p73 = por %p71, %p72
      %p74 = scmp.ne.s32.totalorder %s66, %s68
      %p75 = scmp.eq.s32.totalorder %s16, 1
      %p76 = por %p74, %p75
      %p77 = scmp.ne.s32.totalorder %s68, %s69
      %p78 = scmp.eq.s32.totalorder %s16, 0
      %p79 = por %p77, %p78
      %p80 = scmp.ne.s32.totalorder %s68, %s69
      %p81 = scmp.eq.s32.totalorder %s17, 1
      %p82 = por %p80, %p81
      %p84 = scmp.ne.s32.totalorder %s69, %s83
      %p85 = scmp.eq.s32.totalorder %s17, 0
      %p86 = por %p84, %p85
      %s88 = sadd.s32 %s87, 1
      %p91 = scmp.eq.s32.totalorder %s11, 1
      %p92 = scmp.ne.s32.totalorder %s87, %s89
      %p93 = scmp.eq.s32.totalorder %s11, 0
      %p94 = por %p92, %p93
      %p95 = scmp.ne.s32.totalorder %s87, %s89
      %p96 = scmp.eq.s32.totalorder %s16, 1
      %p97 = por %p95, %p96
      %p98 = scmp.ne.s32.totalorder %s89, %s90
      %p99 = scmp.eq.s32.totalorder %s16, 0
      %p100 = por %p98, %p99
      %p101 = scmp.ne.s32.totalorder %s89, %s90
      %p102 = scmp.eq.s32.totalorder %s17, 1
      %p103 = por %p101, %p102
      %p105 = scmp.ne.s32.totalorder %s90, %s104
      %p106 = scmp.eq.s32.totalorder %s17, 0
      %p107 = por %p105, %p106
      %s108 = ssub.s32 %s11, %s18
      %p109 = scmp.eq.s32.totalorder %s108, 0
      %s111 = sadd.s32 %s110, 1
      %s112 = scalar_select %p109, %s110, %s111
      %p115 = pneg %p109
      %p116 = scmp.eq.s32.totalorder %s11, 1
      %p117 = por %p115, %p116
      %p118 = scmp.ne.s32.totalorder %s110, %s113
      %p119 = scmp.eq.s32.totalorder %s11, 0
      %p120 = por %p118, %p119
      %p121 = scmp.ne.s32.totalorder %s110, %s113
      %p122 = scmp.eq.s32.totalorder %s16, 1
      %p123 = por %p121, %p122
      %p124 = scmp.ne.s32.totalorder %s113, %s114
      %p125 = scmp.eq.s32.totalorder %s16, 0
      %p126 = por %p124, %p125
      %p127 = scmp.ne.s32.totalorder %s113, %s114
      %p128 = scmp.eq.s32.totalorder %s17, 1
      %p129 = por %p127, %p128
      %p131 = scmp.ne.s32.totalorder %s114, %s130
      %p132 = scmp.eq.s32.totalorder %s17, 0
      %p133 = por %p131, %p132
      %p134 = scmp.le.s32.totalorder 1, %s11
      %p135 = scmp.lt.s32.totalorder %s11, 3
      %p136 = pnand %p134, %p135
      %p137 = pneg %p136
      // Predicated region
      $region9: #{tpu_custom_call.1} parent=5 // pred_check
        _
      $region10: #{tpu_custom_call.1} parent=5 // pred_check_branch
        %139 = sbr.rel (%p136) target = $region12
      $region11: #{tpu_custom_call.1} parent=5 // pred_region
        %s140 = ssub.s32 %s11, 1
        // Predicated region
        $region13: #{tpu_custom_call.1} parent=11 // pred_check
          %p141 = pneg %p58
        $region14: #{tpu_custom_call.1} parent=11 // pred_check_branch
          %143 = sbr.rel (%p141) target = $region16
        $region15: #{tpu_custom_call.1} parent=11 // pred_region
          %s145 = ssub.s32 256, 256
          %146 = vsyncadd [#allocation3], %s145
          %s147 = sshll.u32 [#allocation2], 4
          %s148 = int_to_ptr.vmem [resolvable:$true] %s147
          %153 = dma.hbm_to_vmem [thread:$0]  %s1, 256, %s148, [#allocation3], 64, 64, 4
        $region16: #{tpu_custom_call.1} parent=11 // pred_fallthru
          _
        // Predicated region
        $region17: #{tpu_custom_call.1} parent=11 // pred_check
          %p154 = pneg %p79
        $region18: #{tpu_custom_call.1} parent=11 // pred_check_branch
          %156 = sbr.rel (%p154) target = $region20
        $region19: #{tpu_custom_call.1} parent=11 // pred_region
          _
        $region20: #{tpu_custom_call.1} parent=11 // pred_fallthru
          _
        // Predicated region
        $region21: #{tpu_custom_call.1} parent=11 // pred_check
          %p157 = pneg %p100
        $region22: #{tpu_custom_call.1} parent=11 // pred_check_branch
          %159 = sbr.rel (%p157) target = $region24
        $region23: #{tpu_custom_call.1} parent=11 // pred_region
          _
        $region24: #{tpu_custom_call.1} parent=11 // pred_fallthru
          _
      $region12: #{tpu_custom_call.1} parent=5 // pred_fallthru
        _
      %p160 = scmp.lt.s32.totalorder %s11, 2
      // Predicated region
      $region25: #{tpu_custom_call.1} parent=5 // pred_check
        %p161 = pneg %p160
      $region26: #{tpu_custom_call.1} parent=5 // pred_check_branch
        %163 = sbr.rel (%p161) target = $region28
      $region27: #{tpu_custom_call.1} parent=5 // pred_region
        // Predicated region
        $region29: #{tpu_custom_call.1} parent=27 // pred_check
          %p164 = pneg %p31
        $region30: #{tpu_custom_call.1} parent=27 // pred_check_branch
          %166 = sbr.rel (%p164) target = $region32
        $region31: #{tpu_custom_call.1} parent=27 // pred_region
          %p167 = scmp.lt.s32.totalorder %s11, 1
          %s168 = scalar_select %p167, %s11, 1
          %s169 = smul.addr %s168, 4
          %s170 = smul.addr %s169, 8
          %s171 = scalar_lea.vmem %s0, %s170
        $region32: #{tpu_custom_call.1} parent=27 // pred_fallthru
          _
      $region28: #{tpu_custom_call.1} parent=5 // pred_fallthru
        _
      %p172 = scmp.le.s32.totalorder 1, %s11
      %p173 = scmp.lt.s32.totalorder %s11, 3
      %p174 = pnand %p172, %p173
      %p175 = pneg %p174
      // Predicated region
      $region33: #{tpu_custom_call.1} parent=5 // pred_check
        _
      $region34: #{tpu_custom_call.1} parent=5 // pred_check_branch
        %177 = sbr.rel (%p174) target = $region36
      $region35: #{tpu_custom_call.1} parent=5 // pred_region
        %s178 = ssub.s32 %s11, 1
        // Predicated region
        $region37: #{tpu_custom_call.1} parent=35 // pred_check
          %p179 = pneg %p58
        $region38: #{tpu_custom_call.1} parent=35 // pred_check_branch
          %181 = sbr.rel (%p179) target = $region40
        $region39: #{tpu_custom_call.1} parent=35 // pred_region
          %182 = dma.done [#allocation3], 256
        $region40: #{tpu_custom_call.1} parent=35 // pred_fallthru
          _
        %p183 = scmp.lt.s32.totalorder %s16, 1
        %s184 = scalar_select %p183, %s16, 1
        %s185 = smul.addr %s184, 4
        %s186 = smul.addr %s185, 8
        %s187 = scalar_lea.vmem %s0, %s186
        %p188 = pneg %p37
        %p189 = pneg %p34
        %p190 = pneg %p58
        %p191 = pneg %p55
        %p192 = pneg %p79
        %p193 = pneg %p76
        %p194 = pneg %p100
        %p195 = pneg %p97
        %p196 = pneg %p126
        %p197 = pneg %p123
        %p198 = scmp.lt.s32.totalorder %s16, 1
        %s199 = scalar_select %p198, %s16, 1
        %s200 = smul.addr %s199, 4
        %s201 = smul.addr %s200, 8
        %s202 = scalar_lea.vmem %s4, %s201
        %p203 = scmp.lt.s32.totalorder %s16, 1
        %s204 = scalar_select %p203, %s16, 1
        %s205 = smul.addr %s204, 4
        %s206 = smul.addr %s205, 8
        %s207 = scalar_lea.vmem %s0, %s206
        %p208 = scmp.lt.s32.totalorder %s16, 1
        %s209 = scalar_select %p208, %s16, 1
        %s210 = smul.addr %s209, 4
        %s211 = smul.addr %s210, 8
        %s212 = scalar_lea.vmem %s4, %s211
        %v214 = vld [vmem:[#allocation2] sm:$0xf]
        %v215 = vld [vmem:[#allocation2 + $0x4] sm:$0xf]
        %v216 = vld [vmem:[#allocation2 + $0x8] sm:$0xf]
        %v217 = vld [vmem:[#allocation2 + $0xc] sm:$0xf]
        %v218 = vld [vmem:[%s2] sm:$0xff]
        %v219 = vld [vmem:[%s2 + $0x8] sm:$0xff]
        %v220 = vld [vmem:[%s2 + $0x10] sm:$0xff]
        %v221 = vld [vmem:[%s2 + $0x18] sm:$0xff]
        %v222 = vld [vmem:[%s3] sm:$0xff]
        %v223 = vld [vmem:[%s3 + $0x8] sm:$0xff]
        %v224 = vld [vmem:[%s3 + $0x10] sm:$0xff]
        %v225 = vld [vmem:[%s3 + $0x18] sm:$0xff]
        %vm226 = vcmp.gt.f32.partialorder %v222, 0.5
        %vm227 = vcmp.gt.f32.partialorder %v223, 0.5
        %vm228 = vcmp.gt.f32.partialorder %v224, 0.5
        %vm229 = vcmp.gt.f32.partialorder %v225, 0.5
        %v230 = vld [vmem:[%s207] sm:$0xff]
        %v231 = vld [vmem:[%s207 + $0x8] sm:$0xff]
        %v232 = vld [vmem:[%s207 + $0x10] sm:$0xff]
        %v233 = vld [vmem:[%s207 + $0x18] sm:$0xff]
        %v234 = vpack.c.bf16 %v231, %v230
        %v235 = vpack.c.bf16 %v233, %v232
        %v240 = vunpack.c.l.b16 %v214
        %v241 = vunpack.c.l.b16 %v215
        %v242 = vunpack.c.l.b16 %v216
        %v243 = vunpack.c.l.b16 %v217
        %v244 = vpack.c.b16 %v241, %v240
        %v245 = vpack.c.b16 %v243, %v242
        %vm246 = vcmask 261120
        %v248 = vsel %vm246, %v244, 0
        %v251 = vsel %vm246, %v245, 0
        %253 = vmatprep.subr.bf16.mxu0 0
        %254 = vmatpush1.bf16.msra.mxu0 0
        %255 = vmatprep.subr.bf16.mxu0 0
        %256 = vmatpush1.bf16.msra.mxu0 0
        %257 = vmatprep.subr.bf16.mxu0 0
        %258 = vmatpush1.bf16.msra.mxu0 0
        %259 = vmatprep.subr.bf16.mxu0 0
        %260 = vmatpush1.bf16.msra.mxu0 0
        %261 = vmatprep.subr.bf16.mxu0 0
        %262 = vmatpush1.bf16.msra.mxu0 0
        %263 = vmatprep.subr.bf16.mxu0 0
        %264 = vmatpush1.bf16.msra.mxu0 0
        %265 = vmatprep.subr.bf16.mxu0 0
        %266 = vmatpush1.bf16.msra.mxu0 %v235
        %267 = vmatprep.subr.bf16.mxu0 0
        %268 = vmatpush1.bf16.msra.mxu0 %v234
        %269 = vmatprep.subr.bf16.mxu0 0
        %270 = vmatpush2.bf16.msra.mxu0 0
        %271 = vmatprep.subr.bf16.mxu0 0
        %272 = vmatpush2.bf16.msra.mxu0 0
        %273 = vmatprep.subr.bf16.mxu0 0
        %274 = vmatpush2.bf16.msra.mxu0 0
        %275 = vmatprep.subr.bf16.mxu0 0
        %276 = vmatpush2.bf16.msra.mxu0 0
        %277 = vmatprep.subr.bf16.mxu0 0
        %278 = vmatpush2.bf16.msra.mxu0 0
        %279 = vmatprep.subr.bf16.mxu0 0
        %280 = vmatpush2.bf16.msra.mxu0 0
        %281 = vmatprep.subr.bf16.mxu0 0
        %282 = vmatpush2.bf16.msra.mxu0 0
        %283 = vmatprep.subr.bf16.mxu0 0
        %284 = vmatpush2.bf16.msra.mxu0 0
        %285 = vmatprep.mubr.bf16.mxu0 0
        %286 = vmatmul.mubr.bf16.gmra.mxu0 %v248
        %v287 = vpop.f32.mrf.mxu0
        %v288 = vadd.f32 0.0, %v287
        %v289 = vpop.f32.mrf.mxu0
        %v290 = vpop.f32.mrf.mxu0
        %v291 = vadd.f32 0.0, %v290
        %v292 = vpop.f32.mrf.mxu0
        %293 = vmatprep.mubr.bf16.mxu0 0
        %294 = vmatmul.mubr.bf16.gmra.mxu0 %v251
        %v295 = vpop.f32.mrf.mxu0
        %v296 = vadd.f32 0.0, %v295
        %v297 = vpop.f32.mrf.mxu0
        %v298 = vpop.f32.mrf.mxu0
        %v299 = vadd.f32 0.0, %v298
        %v300 = vpop.f32.mrf.mxu0
        %301 = vdwg.mxu0
        %vm302 = vcmask 523264
        %v303 = vsel %vm302, %v288, 0.0
        %304 = vadd.xlane.f32.xlu0 %v303
        %v305 = vpop.xlane.xlu0 %304
        %v306 = vsel %vm302, %v291, 0.0
        %307 = vadd.xlane.f32.xlu0 %v306
        %v308 = vpop.xlane.xlu0 %307
        %v309 = vsel %vm302, %v296, 0.0
        %310 = vadd.xlane.f32.xlu0 %v309
        %v311 = vpop.xlane.xlu0 %310
        %v312 = vsel %vm302, %v299, 0.0
        %313 = vadd.xlane.f32.xlu0 %v312
        %v314 = vpop.xlane.xlu0 %313
        %v315 = vmul.f32 %v305, 0.015625
        %v316 = vmul.f32 %v308, 0.015625
        %v317 = vmul.f32 %v311, 0.015625
        %v318 = vmul.f32 %v314, 0.015625
        %v319 = vsel %vm302, %v288, -inf
        %320 = vmax.xlane.f32.xlu0 %v319
        %v321 = vpop.xlane.xlu0 %320
        %v322 = vsel %vm302, %v291, -inf
        %323 = vmax.xlane.f32.xlu0 %v322
        %v324 = vpop.xlane.xlu0 %323
        %v325 = vsel %vm302, %v296, -inf
        %326 = vmax.xlane.f32.xlu0 %v325
        %v327 = vpop.xlane.xlu0 %326
        %v328 = vsel %vm302, %v299, -inf
        %329 = vmax.xlane.f32.xlu0 %v328
        %v330 = vpop.xlane.xlu0 %329
        %v331 = vsub.f32 %v288, %v321
        %v332 = vsub.f32 %v291, %v324
        %v333 = vsub.f32 %v296, %v327
        %v334 = vsub.f32 %v299, %v330
        %336 = vset.pattern.permute.xlu0 0
        %337 = vperm.xlu0 %336, %v218
        %v338 = vpop.permute.xlu0 %337
        %341 = vset.pattern.permute.xlu0 0
        %342 = vperm.xlu0 %341, %v219
        %v343 = vpop.permute.xlu0 %342
        %346 = vset.pattern.permute.xlu0 0
        %347 = vperm.xlu0 %346, %v220
        %v348 = vpop.permute.xlu0 %347
        %351 = vset.pattern.permute.xlu0 0
        %352 = vperm.xlu0 %351, %v221
        %v353 = vpop.permute.xlu0 %352
        %v355 = vmul.f32 %v338, %v331
        %v356 = vmul.f32 %v343, %v332
        %v357 = vmul.f32 %v348, %v333
        %v358 = vmul.f32 %v353, %v334
        %v359 = vmul.f32 %v355, 1.442695
        %v360 = vpow.pop %v359
        %v361 = vmul.f32 %v356, 1.442695
        %v362 = vpow.pop %v361
        %v363 = vmul.f32 %v357, 1.442695
        %v364 = vpow.pop %v363
        %v365 = vmul.f32 %v358, 1.442695
        %v366 = vpow.pop %v365
        %v367 = vsel %vm302, %v360, 0.0
        %368 = vadd.xlane.f32.xlu0 %v367
        %v369 = vpop.xlane.xlu0 %368
        %v370 = vsel %vm302, %v362, 0.0
        %371 = vadd.xlane.f32.xlu0 %v370
        %v372 = vpop.xlane.xlu0 %371
        %v373 = vsel %vm302, %v364, 0.0
        %374 = vadd.xlane.f32.xlu0 %v373
        %v375 = vpop.xlane.xlu0 %374
        %v376 = vsel %vm302, %v366, 0.0
        %377 = vadd.xlane.f32.xlu0 %v376
        %v378 = vpop.xlane.xlu0 %377
        %v379 = vmul.f32 %v288, %v360
        %v380 = vmul.f32 %v291, %v362
        %v381 = vmul.f32 %v296, %v364
        %v382 = vmul.f32 %v299, %v366
        %v383 = vsel %vm302, %v379, 0.0
        %384 = vadd.xlane.f32.xlu0 %v383
        %v385 = vpop.xlane.xlu0 %384
        %v386 = vsel %vm302, %v380, 0.0
        %387 = vadd.xlane.f32.xlu0 %v386
        %v388 = vpop.xlane.xlu0 %387
        %v389 = vsel %vm302, %v381, 0.0
        %390 = vadd.xlane.f32.xlu0 %v389
        %v391 = vpop.xlane.xlu0 %390
        %v392 = vsel %vm302, %v382, 0.0
        %393 = vadd.xlane.f32.xlu0 %v392
        %v394 = vpop.xlane.xlu0 %393
        %v395 = vrcp.pop %v369
        %v396 = vmul.f32 %v385, %v395
        %v397 = vrcp.pop %v372
        %v398 = vmul.f32 %v388, %v397
        %v399 = vrcp.pop %v375
        %v400 = vmul.f32 %v391, %v399
        %v401 = vrcp.pop %v378
        %v402 = vmul.f32 %v394, %v401
        %v403 = vsel %vm226, %v321, %v396
        %v404 = vsel %vm227, %v324, %v398
        %v405 = vsel %vm228, %v327, %v400
        %v406 = vsel %vm229, %v330, %v402
        %v407 = vmul.f32 %v403, 0.5
        %v408 = vmul.f32 %v404, 0.5
        %v409 = vmul.f32 %v405, 0.5
        %v410 = vmul.f32 %v406, 0.5
        %v411 = vadd.f32 %v315, %v407
        %v412 = vadd.f32 %v316, %v408
        %v413 = vadd.f32 %v317, %v409
        %v414 = vadd.f32 %v318, %v410
        %vm415 = vcmask 7168
        %416 = vst.msk [vmem:[%s212] sm:$0xff] %vm415, %v411
        %417 = vst.msk [vmem:[%s212 + $0x8] sm:$0xff] %vm415, %v412
        %418 = vst.msk [vmem:[%s212 + $0x10] sm:$0xff] %vm415, %v413
        %419 = vst.msk [vmem:[%s212 + $0x18] sm:$0xff] %vm415, %v414
        %p420 = scmp.lt.s32.totalorder %s16, 1
        %s421 = scalar_select %p420, %s16, 1
        %s422 = smul.addr %s421, 4
        %s423 = smul.addr %s422, 8
        %s424 = scalar_lea.vmem %s4, %s423
        // Predicated region
        $region41: #{tpu_custom_call.1} parent=35 // pred_check
          %p425 = pneg %p123
        $region42: #{tpu_custom_call.1} parent=35 // pred_check_branch
          %427 = sbr.rel (%p425) target = $region44
        $region43: #{tpu_custom_call.1} parent=35 // pred_region
          _
        $region44: #{tpu_custom_call.1} parent=35 // pred_fallthru
          _
      $region36: #{tpu_custom_call.1} parent=5 // pred_fallthru
        _
      %p428 = scmp.le.s32.totalorder 2, %s11
      // Predicated region
      $region45: #{tpu_custom_call.1} parent=5 // pred_check
        %p429 = pneg %p428
      $region46: #{tpu_custom_call.1} parent=5 // pred_check_branch
        %431 = sbr.rel (%p429) target = $region48
      $region47: #{tpu_custom_call.1} parent=5 // pred_region
        %s432 = ssub.s32 %s11, 2
        // Predicated region
        $region49: #{tpu_custom_call.1} parent=47 // pred_check
          %p433 = pneg %p129
        $region50: #{tpu_custom_call.1} parent=47 // pred_check_branch
          %435 = sbr.rel (%p433) target = $region52
        $region51: #{tpu_custom_call.1} parent=47 // pred_region
          %p436 = scmp.lt.s32.totalorder %s17, 1
          %s437 = scalar_select %p436, %s17, 1
          %s438 = smul.addr %s437, 4
          %s439 = smul.addr %s438, 8
          %s440 = scalar_lea.vmem %s4, %s439
        $region52: #{tpu_custom_call.1} parent=47 // pred_fallthru
          _
      $region48: #{tpu_custom_call.1} parent=5 // pred_fallthru
        _
    $region6: #{tpu_custom_call.1} parent=1 // loop_footer
      %s15 = sadd.s32 1, %s11
    $region7: #{tpu_custom_call.1} parent=1 // loop_footer_branch
      %10 = sbr.rel target = $region3
    $region8: #{tpu_custom_call.1} parent=1 // loop_exit
      _
    %441 = vsyncpa [#allocation3], 1
    %s442 = scalar_lea.sflag [#allocation3], 1
    %443 = vsyncpa %s442, 1

</llo_original>
